<compile_context>
chip_gen: v6e
topology: v6e:2x2x1
jax: 0.10.0
libtpu: 0.0.40
codegen_flags: <defaults>
</compile_context>

<pallas_src>
import functools

import jax
import jax.numpy as jnp
from jax.experimental import pallas as pl
from jax.experimental.pallas import tpu as pltpu

_LANES = 128
_SUBLANES = 8


def _ceil_div(a, b):
    return -(-a // b)


def _vmem_budget_bytes():
    """Generation-aware VMEM budget (leave ~40% headroom for the compiler)."""
    cap = 64 << 20  # conservative fallback (v7x per-core physical VMEM)
    try:
        info = pltpu.get_tpu_info()
        cap = int(getattr(info, "vmem_capacity_bytes", cap)) or cap
    except Exception:
        pass
    return min(int(cap * 0.6), 96 << 20)


def _powf(x, gamma, log_x=None):
    """x ** gamma for x in (0, 1).

    Small integer gammas stay on the VPU (repeated multiply, zero EUP ops);
    everything else costs one exp (plus one log unless `log_x` is supplied).
    """
    g = float(gamma)
    if g == 0.0:
        return jnp.ones_like(x)
    if g == int(g) and 1.0 <= g <= 4.0:
        r = x
        for _ in range(int(g) - 1):
            r = r * x
        return r
    lx = jnp.log(x) if log_x is None else log_x
    return jnp.exp(g * lx)


def _focal_loss_kernel(pred_ref, tgt_ref, out_ref, acc_ref, *,
                       gamma, eps, w0, w1, binary_targets, total_elems,
                       block_rows, blocks_per_core, mask_start, acc_rows):
    c = pl.program_id(0)                 # TensorCore ("parallel") axis
    i = pl.program_id(1)                 # streaming ("arbitrary") axis
    gblock = c * blocks_per_core + i     # global block index (may exceed last)

    @pl.when(i == 0)
    def _init():
        acc_ref[...] = jnp.zeros_like(acc_ref)

    p = pred_ref[...].astype(jnp.float32)
    p = jnp.clip(p, eps, 1.0 - eps)      # pred.clamp(eps, 1 - eps)
    one_minus_p = 1.0 - p

    if binary_targets:
        # Hard targets (t in {0, 1}): one log per element instead of two.
        t_pos = tgt_ref[...] > 0.5
        x = jnp.where(t_pos, p, one_minus_p)       # prob. of the "true" class
        one_minus_x = 1.0 - x
        log_x = jnp.log(x)
        if w0 is not None:
            coef = jnp.where(t_pos, jnp.float32(w1), jnp.float32(w0))
            loss = coef * _powf(one_minus_x, gamma) * log_x
        else:
            # Parity with the PyTorch module: in the unweighted branch the
            # target==1 term MULTIPLIES (1 - pred) by gamma (not a power).
            factor = jnp.where(t_pos, gamma * one_minus_x,
                               _powf(one_minus_x, gamma))
            loss = factor * log_x
    else:
        t = tgt_ref[...].astype(jnp.float32)
        log_p = jnp.log(p)
        log_1mp = jnp.log(one_minus_p)
        if w0 is not None:
            loss = (w1 * _powf(one_minus_p, gamma, log_1mp) * t * log_p
                    + w0 * _powf(p, gamma, log_p) * (1.0 - t) * log_1mp)
        else:
            loss = ((one_minus_p * gamma) * t * log_p
                    + _powf(p, gamma, log_p) * (1.0 - t) * log_1mp)

    def _reduce(v):
        # Fold the (block_rows, 128) tile into the small accumulator using
        # plain vreg adds (no cross-lane work in the hot loop).
        if acc_rows == _SUBLANES:
            return v.reshape(block_rows // _SUBLANES, _SUBLANES, _LANES).sum(axis=0)
        return jnp.sum(v, axis=0, keepdims=True)   # tiny single-block case

    # Steady-state blocks are fully valid: accumulate unmasked.
    @pl.when(gblock < mask_start)
    def _steady():
        acc_ref[...] += _reduce(loss)

    # Only the last data block (ragged rows / lane padding) and the clamped
    # duplicate block a core may see from the 2-core split need masking.
    @pl.when(gblock >= mask_start)
    def _masked():
        row = jax.lax.broadcasted_iota(jnp.int32, (block_rows, _LANES), 0)
        col = jax.lax.broadcasted_iota(jnp.int32, (block_rows, _LANES), 1)
        grow = gblock * block_rows + row   # global row; int32-safe to ~2^31 rows
        full_rows = total_elems // _LANES
        rem = total_elems % _LANES
        valid = (grow < full_rows) | ((grow == full_rows) & (col < rem))
        acc_ref[...] += _reduce(jnp.where(valid, loss, 0.0))

    @pl.when(i == blocks_per_core - 1)
    def _finalize():
        out_ref[...] = acc_ref[...]        # per-lane partial sums for this core


def focal_loss(pred, target, *, weights=None, gamma=0.0, eps=1e-7,
               block_rows=None, binary_targets=None):
    """Pallas TPU implementation of FocalLoss.forward.

    pred, target: same shape (any rank); pred holds probabilities.
    weights: None or a pair (w0, w1) of python floats.
    binary_targets: if True (or target is boolean), assume target in {0, 1}
      and use a cheaper single-log formulation (identical result for hard
      targets). Default: auto (True only for boolean targets), so float /
      soft targets keep the exact module semantics.
    Returns a float32 scalar equal to mean(-loss).
    """
    assert pred.shape == target.shape
    total_elems = int(pred.size)
    assert total_elems > 0

    if binary_targets is None:
        binary_targets = bool(target.dtype == jnp.bool_)

    # Keep native dtypes (bf16 halves HBM traffic); the kernel upcasts
    # per-tile. Sub-16-bit dtypes are widened to bf16 (exact for {0,1}) so the
    # (rows, 128) tiling stays simple.
    def _widen(x):
        if x.dtype == jnp.bool_ or x.dtype.itemsize < 2:
            return x.astype(jnp.bfloat16)
        return x
    pred = _widen(pred)
    target = _widen(target)

    pred_flat = jnp.ravel(pred)
    tgt_flat = jnp.ravel(target)

    # Lane-dense (rows, 128) view. Pad (and copy) ONLY when the element count
    # is not a multiple of 128; partial last *blocks* are handled in-kernel.
    rem = total_elems % _LANES
    if rem:
        # TODO(synk): a flat 1-D-block (or manual-DMA) path would avoid this
        # full-tensor copy for lane-unaligned sizes.
        pad = _LANES - rem
        pred_flat = jnp.pad(pred_flat, (0, pad),
                            constant_values=jnp.array(0.5, pred_flat.dtype))
        tgt_flat = jnp.pad(tgt_flat, (0, pad))

    n_rows = _ceil_div(total_elems, _LANES)
    pred2d = pred_flat.reshape(n_rows, _LANES)
    tgt2d = tgt_flat.reshape(n_rows, _LANES)

    in_itemsize = pred2d.dtype.itemsize + tgt2d.dtype.itemsize
    budget = _vmem_budget_bytes()

    # Tile size: ~8 MiB of combined input per step (amortizes the ~0.35 us
    # per-step overhead even at v7x's 3.2 TB/s), clamped by the VMEM budget
    # (inputs are double-buffered) and by the array itself.
    if block_rows is None:
        block_rows = (8 << 20) // (_LANES * in_itemsize)
    max_rows_by_vmem = max(16, (budget - (4 << 20)) // (2 * _LANES * in_itemsize))
    block_rows = int(min(block_rows, max_rows_by_vmem, n_rows))
    if block_rows < n_rows:
        # Multiple of 16 keeps both f32 (8) and bf16 (16) sublane tiling happy.
        block_rows = max(16, (block_rows // 16) * 16)
        block_rows = min(block_rows, n_rows)

    n_blocks = _ceil_div(n_rows, block_rows)

    # Split the block range across two TensorCores (v7x); on 1-TC chips the
    # "parallel" axis of size 2 simply runs serially.
    num_cores = 2 if n_blocks >= 2 else 1
    spc = _ceil_div(n_blocks, num_cores)            # blocks per core
    last_partial = (n_rows % block_rows != 0) or (total_elems % _LANES != 0)
    mask_start = n_blocks - 1 if last_partial else n_blocks
    acc_rows = _SUBLANES if block_rows % _SUBLANES == 0 else 1

    if weights is not None:
        w0, w1 = float(weights[0]), float(weights[1])
    else:
        w0, w1 = None, None

    kernel = functools.partial(
        _focal_loss_kernel,
        gamma=float(gamma), eps=float(eps), w0=w0, w1=w1,
        binary_targets=bool(binary_targets), total_elems=total_elems,
        block_rows=block_rows, blocks_per_core=spc, mask_start=mask_start,
        acc_rows=acc_rows)

    def in_index_map(c, i):
        # Clamp so the 2-core split never DMAs past the array; the duplicate
        # block a core may then see is fully masked inside the kernel.
        return (jnp.minimum(c * spc + i, n_blocks - 1), 0)

    # Inputs are double-buffered by the pipeline; accumulator and output are
    # one small block each. Explicit limit so large tiles clear v5e's 16 MiB
    # default scoped-VMEM while staying inside every chip's physical VMEM.
    needed = 2 * block_rows * _LANES * in_itemsize + 4 * acc_rows * _LANES * 4
    vmem_limit = int(min(max(needed + (2 << 20), 8 << 20), budget))

    partials = pl.pallas_call(
        kernel,
        out_shape=jax.ShapeDtypeStruct((num_cores * acc_rows, _LANES),
                                       jnp.float32),
        grid_spec=pltpu.PrefetchScalarGridSpec(
            num_scalar_prefetch=0,
            grid=(num_cores, spc),
            in_specs=[
                pl.BlockSpec((block_rows, _LANES), in_index_map),
                pl.BlockSpec((block_rows, _LANES), in_index_map),
            ],
            out_specs=pl.BlockSpec((acc_rows, _LANES), lambda c, i: (c, 0)),
            scratch_shapes=[pltpu.VMEM((acc_rows, _LANES), jnp.float32)],
        ),
        compiler_params=pltpu.CompilerParams(
            dimension_semantics=("parallel", "arbitrary"),
            vmem_limit_bytes=vmem_limit),
    )(pred2d, tgt2d)

    # torch.mean(torch.neg(loss)): tiny final reduction + negate + divide in
    # the wrapper so each core only dumps its per-lane partial sums.
    return -jnp.sum(partials) / jnp.float32(total_elems)


def _focal_loss_ref(pred, target, *, weights=None, gamma=0.0, eps=1e-7):
    p = jnp.clip(pred.astype(jnp.float32), eps, 1.0 - eps)
    t = target.astype(jnp.float32)
    if weights is not None:
        w0, w1 = weights
        loss = (w1 * (1.0 - p) ** gamma * t * jnp.log(p)
                + w0 * p ** gamma * (1.0 - t) * jnp.log(1.0 - p))
    else:
        loss = ((1.0 - p) * gamma * t * jnp.log(p)
                + p ** gamma * (1.0 - t) * jnp.log(1.0 - p))
    return jnp.mean(-loss)


if __name__ == "__main__":
    key = jax.random.PRNGKey(0)
    kp, kt = jax.random.split(key)

    def check(name, out, ref, rtol=1e-5, atol=1e-6):
        out = jax.block_until_ready(out)
        assert jnp.allclose(out, ref, rtol=rtol, atol=atol), (name, out, ref)

    # NCHW inputs, as a typical caller of this loss would produce.
    shape = (2, 4, 16, 16)
    pred = jax.nn.sigmoid(jax.random.normal(kp, shape, dtype=jnp.float32))
    target = (jax.random.uniform(kt, shape) > 0.5).astype(jnp.float32)
    weights = (0.25, 0.75)

    # Weighted, integer gamma: exact general path and binary fast path.
    ref_w = _focal_loss_ref(pred, target, weights=weights, gamma=2.0)
    check("w-general", focal_loss(pred, target, weights=weights, gamma=2.0),
          ref_w)
    check("w-binary", focal_loss(pred, target, weights=weights, gamma=2.0,
                                 binary_targets=True), ref_w)

    # Unweighted branch (exercises the (1-p)*gamma parity path), both paths.
    ref_nw = _focal_loss_ref(pred, target, weights=None, gamma=2.0)
    check("nw-general", focal_loss(pred, target, weights=None, gamma=2.0),
          ref_nw)
    check("nw-binary", focal_loss(pred, target, weights=None, gamma=2.0,
                                  binary_targets=True), ref_nw)

    # Fractional gamma (exp(g*log) path) on the binary fast path.
    ref_g = _focal_loss_ref(pred, target, weights=weights, gamma=1.5)
    check("frac-gamma", focal_loss(pred, target, weights=weights, gamma=1.5,
                                   binary_targets=True), ref_g)

    # Soft (non-binary) targets take the exact general path by default.
    soft_t = jax.random.uniform(kt, shape, dtype=jnp.float32)
    check("soft-targets",
          focal_loss(pred, soft_t, weights=weights, gamma=2.0),
          _focal_loss_ref(pred, soft_t, weights=weights, gamma=2.0))

    # Boolean targets auto-select the binary fast path (streamed as bf16).
    check("bool-targets",
          focal_loss(pred, target.astype(jnp.bool_), weights=weights,
                     gamma=2.0), ref_w)

    # Ragged size (not a multiple of 128) -> lane padding + in-kernel mask.
    shape_r = (3, 5, 7, 11)
    pred_r = jax.nn.sigmoid(jax.random.normal(kp, shape_r, dtype=jnp.float32))
    target_r = (jax.random.uniform(kt, shape_r) > 0.5).astype(jnp.float32)
    check("ragged",
          focal_loss(pred_r, target_r, weights=weights, gamma=2.0),
          _focal_loss_ref(pred_r, target_r, weights=weights, gamma=2.0))

    # bf16 passthrough, multi-block grid, 2-core split, partial last block.
    shape_b = (4, 8, 32, 32)
    pred_b = jax.nn.sigmoid(
        jax.random.normal(kp, shape_b, dtype=jnp.float32)).astype(jnp.bfloat16)
    target_b = (jax.random.uniform(kt, shape_b) > 0.5).astype(jnp.bfloat16)
    ref_b = _focal_loss_ref(pred_b, target_b, weights=weights, gamma=2.0)
    check("bf16-multiblock",
          focal_loss(pred_b, target_b, weights=weights, gamma=2.0,
                     binary_targets=True, block_rows=48),
          ref_b, rtol=1e-4, atol=1e-5)
    # Odd block count -> one core gets a clamped duplicate block (masked out).
    check("odd-blocks",
          focal_loss(pred_b, target_b, weights=weights, gamma=2.0,
                     block_rows=96),
          ref_b, rtol=1e-4, atol=1e-5)

    print("KERNEL_OK")
</pallas_src>

<mosaic_0001>
module attributes {stable_mosaic.version = 11 : i64} {
  func.func @_focal_loss_kernel(%arg0: i32, %arg1: i32, %arg2: memref<16x128xf32, #tpu.memory_space<vmem>>, %arg3: memref<16x128xf32, #tpu.memory_space<vmem>>, %arg4: memref<8x128xf32, #tpu.memory_space<vmem>>, %arg5: memref<8x128xf32, #tpu.memory_space<vmem>>) attributes {dimension_semantics = [#tpu.dimension_semantics<parallel>, #tpu.dimension_semantics<arbitrary>], iteration_bounds = array<i64: 1, 1>, scalar_prefetch = 0 : i64, scratch_operands = 1 : i64, tpu.core_type = #tpu.core_type<tc>, window_params = [{transform_indices = @transform_0, window_bounds = array<i64: 16, 128>}, {transform_indices = @transform_1, window_bounds = array<i64: 16, 128>}, {transform_indices = @transform_2, window_bounds = array<i64: 8, 128>}]} {
    %c1_i32 = arith.constant 1 : i32
    %0 = arith.muli %arg0, %c1_i32 : i32
    %1 = arith.addi %0, %arg1 : i32
    %c0_i32 = arith.constant 0 : i32
    %2 = arith.cmpi eq, %arg1, %c0_i32 : i32
    %3 = arith.extui %2 : i1 to i32
    %c0_i32_0 = arith.constant 0 : i32
    %4 = arith.cmpi ne, %3, %c0_i32_0 : i32
    scf.if %4 {
      %cst_15 = arith.constant 0.000000e+00 : f32
      %37 = vector.broadcast %cst_15 : f32 to vector<8x128xf32>
      %c0_16 = arith.constant 0 : index
      %c0_17 = arith.constant 0 : index
      %38 = vector.load %arg5[%c0_16, %c0_17] : memref<8x128xf32, #tpu.memory_space<vmem>>, vector<8x128xf32>
      tpu.vector_store %arg5[%c0_16, %c0_17], %37 {strides = array<i32>} : memref<8x128xf32, #tpu.memory_space<vmem>>, vector<8x128xf32>,
    } else {
    }
    %c0 = arith.constant 0 : index
    %c0_1 = arith.constant 0 : index
    %5 = vector.load %arg2[%c0, %c0_1] : memref<16x128xf32, #tpu.memory_space<vmem>>, vector<16x128xf32>
    %cst = arith.constant 1.000000e-07 : f32
    %cst_2 = arith.constant 0.99999988 : f32
    %6 = vector.broadcast %cst : f32 to vector<16x128xf32>
    %7 = arith.maximumf %6, %5 : vector<16x128xf32>
    %8 = vector.broadcast %cst_2 : f32 to vector<16x128xf32>
    %9 = arith.minimumf %8, %7 : vector<16x128xf32>
    %cst_3 = arith.constant 1.000000e+00 : f32
    %10 = vector.broadcast %cst_3 : f32 to vector<16x128xf32>
    %11 = arith.subf %10, %9 : vector<16x128xf32>
    %c0_4 = arith.constant 0 : index
    %c0_5 = arith.constant 0 : index
    %12 = vector.load %arg3[%c0_4, %c0_5] : memref<16x128xf32, #tpu.memory_space<vmem>>, vector<16x128xf32>
    %13 = math.log %9 : vector<16x128xf32>
    %14 = math.log %11 : vector<16x128xf32>
    %15 = arith.mulf %11, %11 : vector<16x128xf32>
    %cst_6 = arith.constant 7.500000e-01 : f32
    %16 = vector.broadcast %cst_6 : f32 to vector<16x128xf32>
    %17 = arith.mulf %16, %15 : vector<16x128xf32>
    %18 = arith.mulf %17, %12 : vector<16x128xf32>
    %19 = arith.mulf %18, %13 : vector<16x128xf32>
    %20 = arith.mulf %9, %9 : vector<16x128xf32>
    %cst_7 = arith.constant 2.500000e-01 : f32
    %21 = vector.broadcast %cst_7 : f32 to vector<16x128xf32>
    %22 = arith.mulf %21, %20 : vector<16x128xf32>
    %cst_8 = arith.constant 1.000000e+00 : f32
    %23 = vector.broadcast %cst_8 : f32 to vector<16x128xf32>
    %24 = arith.subf %23, %12 : vector<16x128xf32>
    %25 = arith.mulf %22, %24 : vector<16x128xf32>
    %26 = arith.mulf %25, %14 : vector<16x128xf32>
    %27 = arith.addf %19, %26 : vector<16x128xf32>
    %c1_i32_9 = arith.constant 1 : i32
    %28 = arith.cmpi slt, %1, %c1_i32_9 : i32
    %29 = arith.extui %28 : i1 to i32
    %c0_i32_10 = arith.constant 0 : i32
    %30 = arith.cmpi ne, %29, %c0_i32_10 : i32
    scf.if %30 {
      %c0_15 = arith.constant 0 : index
      %c0_16 = arith.constant 0 : index
      %37 = vector.load %arg5[%c0_15, %c0_16] : memref<8x128xf32, #tpu.memory_space<vmem>>, vector<8x128xf32>
      %38 = vector.shape_cast %27 : vector<16x128xf32> to vector<2x8x128xf32>
      %cst_17 = arith.constant dense<0.000000e+00> : vector<8x128xf32>
      %39 = vector.multi_reduction <add>, %38, %cst_17 [0] : vector<2x8x128xf32> to vector<8x128xf32>
      %40 = arith.addf %37, %39 : vector<8x128xf32>
      %c0_18 = arith.constant 0 : index
      %c0_19 = arith.constant 0 : index
      %41 = vector.load %arg5[%c0_18, %c0_19] : memref<8x128xf32, #tpu.memory_space<vmem>>, vector<8x128xf32>
      tpu.vector_store %arg5[%c0_18, %c0_19], %40 {strides = array<i32>} : memref<8x128xf32, #tpu.memory_space<vmem>>, vector<8x128xf32>,
    } else {
    }
    %c1_i32_11 = arith.constant 1 : i32
    %31 = arith.cmpi sge, %1, %c1_i32_11 : i32
    %32 = arith.extui %31 : i1 to i32
    %c0_i32_12 = arith.constant 0 : i32
    %33 = arith.cmpi ne, %32, %c0_i32_12 : i32
    scf.if %33 {
      %37 = tpu.iota {dimensions = array<i32: 0>} : vector<16x128xi32>
      %38 = tpu.iota {dimensions = array<i32: 1>} : vector<16x128xi32>
      %c16_i32 = arith.constant 16 : i32
      %39 = arith.muli %1, %c16_i32 : i32
      %40 = vector.broadcast %39 : i32 to vector<16x128xi32>
      %41 = arith.addi %40, %37 : vector<16x128xi32>
      %c16_i32_15 = arith.constant 16 : i32
      %42 = vector.broadcast %c16_i32_15 : i32 to vector<16x128xi32>
      %43 = arith.cmpi slt, %41, %42 : vector<16x128xi32>
      %c16_i32_16 = arith.constant 16 : i32
      %44 = vector.broadcast %c16_i32_16 : i32 to vector<16x128xi32>
      %45 = arith.cmpi eq, %41, %44 : vector<16x128xi32>
      %c0_i32_17 = arith.constant 0 : i32
      %46 = vector.broadcast %c0_i32_17 : i32 to vector<16x128xi32>
      %47 = arith.cmpi slt, %38, %46 : vector<16x128xi32>
      %48 = arith.andi %45, %47 : vector<16x128xi1>
      %49 = arith.ori %43, %48 : vector<16x128xi1>
      %c0_18 = arith.constant 0 : index
      %c0_19 = arith.constant 0 : index
      %50 = vector.load %arg5[%c0_18, %c0_19] : memref<8x128xf32, #tpu.memory_space<vmem>>, vector<8x128xf32>
      %cst_20 = arith.constant 0.000000e+00 : f32
      %51 = vector.broadcast %cst_20 : f32 to vector<16x128xf32>
      %52 = arith.select %49, %27, %51 : vector<16x128xi1>, vector<16x128xf32>
      %53 = vector.shape_cast %52 : vector<16x128xf32> to vector<2x8x128xf32>
      %cst_21 = arith.constant dense<0.000000e+00> : vector<8x128xf32>
      %54 = vector.multi_reduction <add>, %53, %cst_21 [0] : vector<2x8x128xf32> to vector<8x128xf32>
      %55 = arith.addf %50, %54 : vector<8x128xf32>
      %c0_22 = arith.constant 0 : index
      %c0_23 = arith.constant 0 : index
      %56 = vector.load %arg5[%c0_22, %c0_23] : memref<8x128xf32, #tpu.memory_space<vmem>>, vector<8x128xf32>
      tpu.vector_store %arg5[%c0_22, %c0_23], %55 {strides = array<i32>} : memref<8x128xf32, #tpu.memory_space<vmem>>, vector<8x128xf32>,
    } else {
    }
    %c0_i32_13 = arith.constant 0 : i32
    %34 = arith.cmpi eq, %arg1, %c0_i32_13 : i32
    %35 = arith.extui %34 : i1 to i32
    %c0_i32_14 = arith.constant 0 : i32
    %36 = arith.cmpi ne, %35, %c0_i32_14 : i32
    scf.if %36 {
      %c0_15 = arith.constant 0 : index
      %c0_16 = arith.constant 0 : index
      %37 = vector.load %arg5[%c0_15, %c0_16] : memref<8x128xf32, #tpu.memory_space<vmem>>, vector<8x128xf32>
      %c0_17 = arith.constant 0 : index
      %c0_18 = arith.constant 0 : index
      %38 = vector.load %arg4[%c0_17, %c0_18] : memref<8x128xf32, #tpu.memory_space<vmem>>, vector<8x128xf32>
      tpu.vector_store %arg4[%c0_17, %c0_18], %37 {strides = array<i32>} : memref<8x128xf32, #tpu.memory_space<vmem>>, vector<8x128xf32>,
    } else {
    }
    return
  }
  func.func @transform_0(%arg0: i32, %arg1: i32) -> (i32, i32) {
    %c1_i32 = arith.constant 1 : i32
    %0 = arith.muli %arg0, %c1_i32 : i32
    %1 = arith.addi %0, %arg1 : i32
    %c0_i32 = arith.constant 0 : i32
    %2 = arith.minsi %1, %c0_i32 : i32
    %c0_i32_0 = arith.constant 0 : i32
    %c0_i32_1 = arith.constant 0 : i32
    return %2, %c0_i32_0 : i32, i32
  }
  func.func @transform_1(%arg0: i32, %arg1: i32) -> (i32, i32) {
    %c1_i32 = arith.constant 1 : i32
    %0 = arith.muli %arg0, %c1_i32 : i32
    %1 = arith.addi %0, %arg1 : i32
    %c0_i32 = arith.constant 0 : i32
    %2 = arith.minsi %1, %c0_i32 : i32
    %c0_i32_0 = arith.constant 0 : i32
    %c0_i32_1 = arith.constant 0 : i32
    return %2, %c0_i32_0 : i32, i32
  }
  func.func @transform_2(%arg0: i32, %arg1: i32) -> (i32, i32) {
    %c0_i32 = arith.constant 0 : i32
    %c0_i32_0 = arith.constant 0 : i32
    return %arg0, %c0_i32 : i32, i32
  }
}

</mosaic_0001>

<llo_original>
// kernel: tpu_custom_call.1
$region0: #{tpu_custom_call.1}
  #allocation0 [shape = 'u32[]', space=smem, size = 0x4, offset = 0x4, fixed_abs, tag = 'smem constant byte address 0x4 - core index']
  #allocation1 [shape = 'u32[144,128]{1,0:T(1,128)}', space=vmem, size = 0x12000, scoped, tag = 'internal scratch']
  #allocation2 [shape = 'f32[8,128]{1,0:T(8,128)}', space=vmem, size = 0x1000, scoped, tag = 'scratch operand']
  %s0 = inlined_call_operand.hbm [shape: f32[16,128], index: 0, kind: input, shape index: {}]
  %s1 = inlined_call_operand.hbm [shape: f32[16,128], index: 1, kind: input, shape index: {}]
  %s2 = inlined_call_operand.hbm [shape: f32[8,128], index: 2, kind: output, shape index: {}]
  %s3 = sld [smem:[#allocation0]]
  $region42: #{tpu_custom_call.1} parent=0
    _
  %s5 = ssub.s32 1, %s3
  %s6 = scalar_select 0, %s5, %s3
  $region1: #{tpu_custom_call.1} parent=0
    #allocation3 [shape = 'u8[8192]{0}', space=vmem, size = 0x2000, scoped, tag = 'input window, operand 0, single buffered']
    #allocation4 [shape = 's32[1]{0}', space=sflag, size = 0x4, scoped, tag = 'scoped memory for tpu_custom_call.1']
    #allocation5 [shape = 's32[1]{0}', space=sflag, size = 0x4, scoped, tag = 'scoped memory for tpu_custom_call.1']
    #allocation6 [shape = 'u8[8192]{0}', space=vmem, size = 0x2000, scoped, tag = 'input window, operand 1, single buffered']
    #allocation7 [shape = 's32[1]{0}', space=sflag, size = 0x4, scoped, tag = 'scoped memory for tpu_custom_call.1']
    #allocation8 [shape = 'u8[4096]{0}', space=vmem, size = 0x1000, scoped, tag = 'output window, operand 0, single buffered']
    %7 = vsyncpa [#allocation4], 0
    %8 = vsyncpa [#allocation7], 0
    %9 = vsyncpa [#allocation5], 0
    // Predicated region
    $region2: #{tpu_custom_call.1} parent=1 // pred_check
      _
    $region3: #{tpu_custom_call.1} parent=1 // pred_check_branch
      %11 = sbr.rel (0) target = $region5
    $region4: #{tpu_custom_call.1} parent=1 // pred_region
      %s12 = sadd.s32 0, 0
      %p13 = scmp.lt.s32.totalorder %s12, 0
      %s14 = scalar_select %p13, %s12, 0
      %s15 = smul.u32 2, %s14
      %s17 = ssub.s32 256, 256
      %18 = vsyncadd [#allocation4], %s17
      %s19 = smul.addr %s15, 128
      %s20 = scalar_lea.hbm %s0, %s19
      %s21 = sshll.u32 [#allocation3], 4
      %s22 = int_to_ptr.vmem [resolvable:$true] %s21
      %27 = dma.hbm_to_vmem [thread:$0]  %s20, 256, %s22, [#allocation4], 128, 128, 8
    $region5: #{tpu_custom_call.1} parent=1 // pred_fallthru
      _
    // Predicated region
    $region6: #{tpu_custom_call.1} parent=1 // pred_check
      _
    $region7: #{tpu_custom_call.1} parent=1 // pred_check_branch
      %29 = sbr.rel (0) target = $region9
    $region8: #{tpu_custom_call.1} parent=1 // pred_region
      %s30 = sadd.s32 0, 0
      %p31 = scmp.lt.s32.totalorder %s30, 0
      %s32 = scalar_select %p31, %s30, 0
      %s33 = smul.u32 2, %s32
      %s35 = ssub.s32 256, 256
      %36 = vsyncadd [#allocation7], %s35
      %s37 = smul.addr %s33, 128
      %s38 = scalar_lea.hbm %s1, %s37
      %s39 = sshll.u32 [#allocation6], 4
      %s40 = int_to_ptr.vmem [resolvable:$true] %s39
      %45 = dma.hbm_to_vmem [thread:$0]  %s38, 256, %s40, [#allocation7], 128, 128, 8
    $region9: #{tpu_custom_call.1} parent=1 // pred_fallthru
      _
    // Predicated region
    $region10: #{tpu_custom_call.1} parent=1 // pred_check
      _
    $region11: #{tpu_custom_call.1} parent=1 // pred_check_branch
      %47 = sbr.rel (0) target = $region13
    $region12: #{tpu_custom_call.1} parent=1 // pred_region
      %48 = dma.done [#allocation4], 256
    $region13: #{tpu_custom_call.1} parent=1 // pred_fallthru
      _
    // Predicated region
    $region14: #{tpu_custom_call.1} parent=1 // pred_check
      _
    $region15: #{tpu_custom_call.1} parent=1 // pred_check_branch
      %50 = sbr.rel (0) target = $region17
    $region16: #{tpu_custom_call.1} parent=1 // pred_region
      %51 = dma.done [#allocation7], 256
    $region17: #{tpu_custom_call.1} parent=1 // pred_fallthru
      _
    %s52 = sadd.s32 0, 0
    %p53 = scmp.lt.s32.totalorder %s52, 0
    %s54 = scalar_select %p53, %s52, 0
    %s55 = smul.u32 2, %s54
    %s56 = sadd.s32 0, 0
    %p57 = scmp.lt.s32.totalorder %s56, 0
    %s58 = scalar_select %p57, %s56, 0
    %s59 = smul.u32 2, %s58
    %s60 = sadd.s32 0, 0
    %p61 = scmp.eq.s32.totalorder 0, 0
    // Predicated region
    $region18: #{tpu_custom_call.1} parent=1 // pred_check
      %p62 = pneg %p61
    $region19: #{tpu_custom_call.1} parent=1 // pred_check_branch
      %64 = sbr.rel (%p62) target = $region21
    $region20: #{tpu_custom_call.1} parent=1 // pred_region
      %65 = vst [vmem:[#allocation2] sm:$0xff] 0.0
    $region21: #{tpu_custom_call.1} parent=1 // pred_fallthru
      _
    %v66 = vld [vmem:[#allocation3] sm:$0xff]
    %v67 = vld [vmem:[#allocation3 + $0x8] sm:$0xff]
    %v68 = vmax.f32 %v66, 1e-07
    %v69 = vmax.f32 %v67, 1e-07
    %v70 = vmin.f32 %v68, 0.9999999
    %v71 = vmin.f32 %v69, 0.9999999
    %v72 = vsub.f32 1.0, %v70
    %v73 = vsub.f32 1.0, %v71
    %v74 = vld [vmem:[#allocation6] sm:$0xff]
    %v75 = vld [vmem:[#allocation6 + $0x8] sm:$0xff]
    %v76 = vlog2.pop %v70
    %v77 = vmul.f32 %v76, 0.6931472
    %v78 = vlog2.pop %v71
    %v79 = vmul.f32 %v78, 0.6931472
    %v80 = vlog2.pop %v72
    %v81 = vmul.f32 %v80, 0.6931472
    %v82 = vlog2.pop %v73
    %v83 = vmul.f32 %v82, 0.6931472
    %v84 = vmul.f32 %v72, %v72
    %v85 = vmul.f32 %v73, %v73
    %v86 = vmul.f32 %v84, 0.75
    %v87 = vmul.f32 %v85, 0.75
    %v88 = vmul.f32 %v86, %v74
    %v89 = vmul.f32 %v87, %v75
    %v90 = vmul.f32 %v88, %v77
    %v91 = vmul.f32 %v89, %v79
    %v92 = vmul.f32 %v70, %v70
    %v93 = vmul.f32 %v71, %v71
    %v94 = vmul.f32 %v92, 0.25
    %v95 = vmul.f32 %v93, 0.25
    %v96 = vsub.f32 1.0, %v74
    %v97 = vsub.f32 1.0, %v75
    %v98 = vmul.f32 %v94, %v96
    %v99 = vmul.f32 %v95, %v97
    %v100 = vmul.f32 %v98, %v81
    %v101 = vmul.f32 %v99, %v83
    %v102 = vadd.f32 %v90, %v100
    %v103 = vadd.f32 %v91, %v101
    %p104 = scmp.lt.s32.totalorder %s60, 1
    // Predicated region
    $region22: #{tpu_custom_call.1} parent=1 // pred_check
      %p105 = pneg %p104
    $region23: #{tpu_custom_call.1} parent=1 // pred_check_branch
      %107 = sbr.rel (%p105) target = $region25
    $region24: #{tpu_custom_call.1} parent=1 // pred_region
      %v108 = vld [vmem:[#allocation2] sm:$0xff]
      %v109 = vadd.f32 %v102, %v103
      %v110 = vadd.f32 %v108, %v109
      %111 = vst [vmem:[#allocation2] sm:$0xff] %v110
    $region25: #{tpu_custom_call.1} parent=1 // pred_fallthru
      _
    %p112 = scmp.ge.s32.totalorder %s60, 1
    // Predicated region
    $region26: #{tpu_custom_call.1} parent=1 // pred_check
      %p113 = pneg %p112
    $region27: #{tpu_custom_call.1} parent=1 // pred_check_branch
      %115 = sbr.rel (%p113) target = $region29
    $region28: #{tpu_custom_call.1} parent=1 // pred_region
      %v116 = vlaneseq
      %v117 = vshrl.u32 %v116, 7
      %v118 = vadd.s32 %v117, 8
      %v119 = vlaneseq
      %v120 = vand.u32 %v119, 127
      %s121 = smul.u32 %s60, 16
      %v122 = vstv %s121
      %v123 = vadd.s32 %v122, %v117
      %v124 = vadd.s32 %v122, %v118
      %vm125 = vcmp.lt.s32.totalorder %v123, 16
      %vm126 = vcmp.lt.s32.totalorder %v124, 16
      %vm127 = vcmp.eq.s32.totalorder %v123, 16
      %vm128 = vcmp.eq.s32.totalorder %v124, 16
      %vm129 = vcmp.lt.s32.totalorder %v120, 0
      %vm130 = vmand %vm127, %vm129
      %vm131 = vmand %vm128, %vm129
      %vm132 = vmor %vm125, %vm130
      %vm133 = vmor %vm126, %vm131
      %v134 = vld [vmem:[#allocation2] sm:$0xff]
      %v135 = vsel %vm132, %v102, 0.0
      %v136 = vsel %vm133, %v103, 0.0
      %v137 = vadd.f32 %v135, %v136
      %v138 = vadd.f32 %v134, %v137
      %139 = vst [vmem:[#allocation2] sm:$0xff] %v138
    $region29: #{tpu_custom_call.1} parent=1 // pred_fallthru
      _
    // Predicated region
    $region30: #{tpu_custom_call.1} parent=1 // pred_check
      %p140 = pneg %p61
    $region31: #{tpu_custom_call.1} parent=1 // pred_check_branch
      %142 = sbr.rel (%p140) target = $region33
    $region32: #{tpu_custom_call.1} parent=1 // pred_region
      %v143 = vld [vmem:[#allocation2] sm:$0xff]
      %144 = vst [vmem:[#allocation8] sm:$0xff] %v143
    $region33: #{tpu_custom_call.1} parent=1 // pred_fallthru
      _
    // Predicated region
    $region34: #{tpu_custom_call.1} parent=1 // pred_check
      _
    $region35: #{tpu_custom_call.1} parent=1 // pred_check_branch
      %146 = sbr.rel (0) target = $region37
    $region36: #{tpu_custom_call.1} parent=1 // pred_region
      %s148 = ssub.s32 128, 128
      %149 = vsyncadd [#allocation5], %s148
      %s151 = sshll.u32 [#allocation8], 4
      %s152 = int_to_ptr.vmem [resolvable:$true] %s151
      %154 = dma.vmem_to_hbm [thread:$0]  %s152, 128, %s2, [#allocation5]
    $region37: #{tpu_custom_call.1} parent=1 // pred_fallthru
      _
    // Predicated region
    $region38: #{tpu_custom_call.1} parent=1 // pred_check
      _
    $region39: #{tpu_custom_call.1} parent=1 // pred_check_branch
      %156 = sbr.rel (0) target = $region41
    $region40: #{tpu_custom_call.1} parent=1 // pred_region
      %157 = dma.done [#allocation5], 128
    $region41: #{tpu_custom_call.1} parent=1 // pred_fallthru
      _
    %158 = vsyncpa [#allocation4], 1
    %159 = vsyncpa [#allocation7], 1
    %160 = vsyncpa [#allocation5], 1

</llo_original>
